<compile_context>
chip_gen: v5e
topology: v5e:2x2
jax: 0.10.0
libtpu: 0.0.40
codegen_flags: <defaults>
</compile_context>

<pallas_src>
import jax
import jax.numpy as jnp
from jax.experimental import pallas as pl
from jax.experimental.pallas import tpu as pltpu

NUMBER_TASKS = 10
INPUT_DIM = 2 * NUMBER_TASKS        # 20
HIDDEN_DIM = 5 * INPUT_DIM          # 100
OUTPUT_DIM = INPUT_DIM              # 20

PAD = 128                           # lane-dim padding for the hidden feature axis
N_LAYERS = 5

# Only split a single-tile batch in two (for v7x's 2 TensorCores) when it is at
# least this many rows; smaller batches aren't worth the extra grid step.
_MIN_SPLIT_ROWS = 512


def _cdiv(a, b):
    return -(-a // b)


def _round_up(a, m):
    return _cdiv(a, m) * m


def _mlp_kernel(x_ref, w_ref, b_ref, out_ref, coded_ref, xpad_ref):
    """Full 5-layer MLP on one (tb, INPUT_DIM) batch tile.

    x_ref:     (tb, INPUT_DIM)   natural-width activations, fp32
    w_ref:     (5, 128, 128)     packed zero-padded weights (bf16 or fp32), resident
    b_ref:     (5, 1, 128)       packed zero-padded biases, fp32, resident
    out_ref:   (tb, OUTPUT_DIM)  sinh(fc10) output (natural width)
    coded_ref: (tb, HIDDEN_DIM)  tanh(fc5) output  (natural width)
    xpad_ref:  (tb, 128)         VMEM scratch used to zero-pad x to 128 lanes
    """
    wd = w_ref.dtype

    def linear(h, i):
        # Cast LHS to the weight dtype (no-op for fp32) so bf16 weights hit the
        # MXU natively on v6e/v7x; accumulation stays fp32. The tanh/exp chain
        # stays fp32 everywhere (required on v5e's VPU/EUP).
        # TODO(synk): on v7x evaluate a bf16 tanh/exp chain (2x EUP throughput).
        return jnp.dot(h.astype(wd), w_ref[i],
                       preferred_element_type=jnp.float32) + b_ref[i]

    # Zero-pad the input tile to 128 lanes entirely in VMEM -- no separate XLA
    # pad pass round-tripping a (B, 128) array through HBM. Zeroing the scratch
    # every iteration keeps this correct under megacore grid sharding.
    xpad_ref[...] = jnp.zeros_like(xpad_ref)
    xpad_ref[:, :INPUT_DIM] = x_ref[...]
    x = xpad_ref[...]

    h = jnp.tanh(linear(x, 0))              # fc1
    coded = jnp.tanh(linear(h, 1))          # fc5
    coded_ref[...] = coded[:, :HIDDEN_DIM]  # natural-width store
    h = jnp.tanh(linear(coded, 2))          # fc6
    h = jnp.tanh(linear(h, 3))              # fc9
    z = linear(h, 4)[:, :OUTPUT_DIM]        # fc10, natural width

    # sinh via a single EUP exp + exact divide (exact divide keeps the fp32 path
    # within 1e-4 of jnp.sinh; approx reciprocal is too coarse for that bar).
    # TODO(synk): for tight *relative* accuracy near z == 0 switch to an
    # expm1-based formulation (torch.sinh behavior).
    ez = jnp.exp(z)
    out_ref[...] = 0.5 * (ez - 1.0 / ez)


def _pad2(a, rows, cols):
    return jnp.zeros((rows, cols), a.dtype).at[:a.shape[0], :a.shape[1]].set(a)


def pack_params(params, weight_dtype=jnp.bfloat16):
    """Pack 5 (in,out) weights / biases into single zero-padded operands (2 DMAs)."""
    names = [("w1", "b1"), ("w5", "b5"), ("w6", "b6"), ("w9", "b9"), ("w10", "b10")]
    w_packed = jnp.stack([_pad2(params[w], PAD, PAD) for w, _ in names]
                         ).astype(weight_dtype)
    b_packed = jnp.stack([_pad2(params[b], 1, PAD) for _, b in names]
                         ).astype(jnp.float32)
    return w_packed, b_packed


def _choose_tile(B, batch_tile):
    tb = min(batch_tile, _round_up(max(B, 1), 8))
    # v7x has 2 TensorCores: if the whole (large) batch would fit in one grid
    # step, halve the tile so the "parallel" grid has >= 2 steps.
    if _cdiv(B, tb) == 1 and B >= 2 * _MIN_SPLIT_ROWS:
        tb = _round_up(_cdiv(B, 2), 8)
    return tb


def net_forward_packed(x, w_packed, b_packed, *, batch_tile=2048):
    """Pallas forward pass on pre-packed params. Returns (output, coded)."""
    B = x.shape[0]
    tb = _choose_tile(B, batch_tile)
    grid = _cdiv(B, tb)
    x = x.astype(jnp.float32)

    out, coded = pl.pallas_call(
        _mlp_kernel,
        grid=(grid,),
        in_specs=[
            pl.BlockSpec((tb, INPUT_DIM), lambda i: (i, 0)),          # batch tile
            pl.BlockSpec((N_LAYERS, PAD, PAD), lambda i: (0, 0, 0)),  # weights (resident)
            pl.BlockSpec((N_LAYERS, 1, PAD), lambda i: (0, 0, 0)),    # biases  (resident)
        ],
        out_specs=(
            pl.BlockSpec((tb, OUTPUT_DIM), lambda i: (i, 0)),
            pl.BlockSpec((tb, HIDDEN_DIM), lambda i: (i, 0)),
        ),
        out_shape=(jax.ShapeDtypeStruct((B, OUTPUT_DIM), jnp.float32),
                   jax.ShapeDtypeStruct((B, HIDDEN_DIM), jnp.float32)),
        scratch_shapes=[pltpu.VMEM((tb, PAD), jnp.float32)],
        compiler_params=pltpu.CompilerParams(
            dimension_semantics=("parallel",)),   # shards batch across v7x's 2 TCs
    )(x, w_packed, b_packed)
    return out, coded


def make_net_forward(params, *, weight_dtype=jnp.bfloat16, batch_tile=2048):
    """Pack params once (hoisted out of the per-call path) and return a jitted
    forward: x -> (output, coded)."""
    w_packed, b_packed = pack_params(params, weight_dtype)

    def fwd(x):
        return net_forward_packed(x, w_packed, b_packed, batch_tile=batch_tile)

    return jax.jit(fwd)


def net_forward(x, params, *, weight_dtype=jnp.bfloat16, batch_tile=2048):
    """One-shot convenience wrapper (packs params on every call)."""
    w_packed, b_packed = pack_params(params, weight_dtype)
    return net_forward_packed(x, w_packed, b_packed, batch_tile=batch_tile)


def init_params(key):
    """PyTorch nn.Linear-style init: uniform +/- 1/sqrt(fan_in).
    Weights stored (in_features, out_features); biases (1, out_features)."""
    def linear(k, fan_in, fan_out):
        kw, kb = jax.random.split(k)
        bound = 1.0 / jnp.sqrt(fan_in)
        w = jax.random.uniform(kw, (fan_in, fan_out), jnp.float32, -bound, bound)
        b = jax.random.uniform(kb, (1, fan_out), jnp.float32, -bound, bound)
        return w, b

    keys = jax.random.split(key, 5)
    w1, b1 = linear(keys[0], INPUT_DIM, HIDDEN_DIM)
    w5, b5 = linear(keys[1], HIDDEN_DIM, HIDDEN_DIM)
    w6, b6 = linear(keys[2], HIDDEN_DIM, HIDDEN_DIM)
    w9, b9 = linear(keys[3], HIDDEN_DIM, HIDDEN_DIM)
    w10, b10 = linear(keys[4], HIDDEN_DIM, OUTPUT_DIM)
    return {"w1": w1, "b1": b1, "w5": w5, "b5": b5, "w6": w6, "b6": b6,
            "w9": w9, "b9": b9, "w10": w10, "b10": b10}


def reference_forward(x, p):
    h = jnp.tanh(x @ p["w1"] + p["b1"])
    coded = jnp.tanh(h @ p["w5"] + p["b5"])
    h = jnp.tanh(coded @ p["w6"] + p["b6"])
    h = jnp.tanh(h @ p["w9"] + p["b9"])
    out = jnp.sinh(h @ p["w10"] + p["b10"])
    return out, coded


if __name__ == "__main__":
    key = jax.random.PRNGKey(0)
    kx, kp, kx2 = jax.random.split(key, 3)
    params = init_params(kp)

    batch = 8
    x = jax.random.normal(kx, (batch, INPUT_DIM), jnp.float32)
    ref_out, ref_coded = reference_forward(x, params)

    # fp32-weight path: tight match with the fp32 reference.
    fwd_f32 = make_net_forward(params, weight_dtype=jnp.float32)
    out, coded = fwd_f32(x)
    out = jax.block_until_ready(out)
    coded = jax.block_until_ready(coded)
    assert out.shape == (batch, OUTPUT_DIM)
    assert coded.shape == (batch, HIDDEN_DIM)
    assert jnp.allclose(out, ref_out, atol=1e-4, rtol=1e-4)
    assert jnp.allclose(coded, ref_coded, atol=1e-4, rtol=1e-4)

    # Default bf16-weight path (native MXU dtype on v6e/v7x): looser tolerance.
    fwd_bf16 = make_net_forward(params)
    out_bf, coded_bf = fwd_bf16(x)
    jax.block_until_ready((out_bf, coded_bf))
    assert jnp.allclose(out_bf, ref_out, atol=5e-2, rtol=5e-2)
    assert jnp.allclose(coded_bf, ref_coded, atol=5e-2, rtol=5e-2)

    # Ragged batch (not a sublane multiple) exercises the partial-block path:
    # OOB rows compute garbage in VMEM but their writebacks are masked.
    batch2 = 50
    x2 = jax.random.normal(kx2, (batch2, INPUT_DIM), jnp.float32)
    ref_out2, ref_coded2 = reference_forward(x2, params)
    out2, coded2 = fwd_f32(x2)
    jax.block_until_ready((out2, coded2))
    assert out2.shape == (batch2, OUTPUT_DIM)
    assert coded2.shape == (batch2, HIDDEN_DIM)
    assert jnp.allclose(out2, ref_out2, atol=1e-4, rtol=1e-4)
    assert jnp.allclose(coded2, ref_coded2, atol=1e-4, rtol=1e-4)

    print("KERNEL_OK")
</pallas_src>

<mosaic_0001>
module attributes {stable_mosaic.version = 11 : i64} {
  func.func @_mlp_kernel(%arg0: i32, %arg1: memref<8x20xf32, #tpu.memory_space<vmem>>, %arg2: memref<5x128x128xf32, #tpu.memory_space<vmem>>, %arg3: memref<5x1x128xf32, #tpu.memory_space<vmem>>, %arg4: memref<8x20xf32, #tpu.memory_space<vmem>>, %arg5: memref<8x100xf32, #tpu.memory_space<vmem>>, %arg6: memref<8x128xf32, #tpu.memory_space<vmem>>) attributes {dimension_semantics = [#tpu.dimension_semantics<parallel>], iteration_bounds = array<i64: 1>, scalar_prefetch = 0 : i64, scratch_operands = 1 : i64, tpu.core_type = #tpu.core_type<tc>, window_params = [{transform_indices = @transform_0, window_bounds = array<i64: 8, 20>}, {pipeline_mode = #tpu.pipeline_mode<synchronous>, transform_indices = @transform_1, window_bounds = array<i64: 5, 128, 128>}, {pipeline_mode = #tpu.pipeline_mode<synchronous>, transform_indices = @transform_2, window_bounds = array<i64: 5, 1, 128>}, {transform_indices = @transform_3, window_bounds = array<i64: 8, 20>}, {transform_indices = @transform_4, window_bounds = array<i64: 8, 100>}]} {
    %cst = arith.constant 0.000000e+00 : f32
    %0 = vector.broadcast %cst : f32 to vector<8x128xf32>
    %c0 = arith.constant 0 : index
    %c0_0 = arith.constant 0 : index
    %1 = vector.load %arg6[%c0, %c0_0] : memref<8x128xf32, #tpu.memory_space<vmem>>, vector<8x128xf32>
    tpu.vector_store %arg6[%c0, %c0_0], %0 {strides = array<i32>} : memref<8x128xf32, #tpu.memory_space<vmem>>, vector<8x128xf32>,
    %c0_1 = arith.constant 0 : index
    %c0_2 = arith.constant 0 : index
    %2 = vector.load %arg1[%c0_1, %c0_2] : memref<8x20xf32, #tpu.memory_space<vmem>>, vector<8x20xf32>
    %c0_3 = arith.constant 0 : index
    %c0_4 = arith.constant 0 : index
    %3 = vector.load %arg6[%c0_3, %c0_4] : memref<8x128xf32, #tpu.memory_space<vmem>>, vector<8x20xf32>
    tpu.vector_store %arg6[%c0_3, %c0_4], %2 {strides = array<i32>} : memref<8x128xf32, #tpu.memory_space<vmem>>, vector<8x20xf32>,
    %c0_5 = arith.constant 0 : index
    %c0_6 = arith.constant 0 : index
    %4 = vector.load %arg6[%c0_5, %c0_6] : memref<8x128xf32, #tpu.memory_space<vmem>>, vector<8x128xf32>
    %c0_7 = arith.constant 0 : index
    %c0_8 = arith.constant 0 : index
    %c0_9 = arith.constant 0 : index
    %5 = vector.load %arg2[%c0_7, %c0_8, %c0_9] : memref<5x128x128xf32, #tpu.memory_space<vmem>>, vector<1x128x128xf32>
    %6 = vector.shape_cast %5 : vector<1x128x128xf32> to vector<128x128xf32>
    %cst_10 = arith.constant dense<0.000000e+00> : vector<8x128xf32>
    %7 = tpu.matmul %4, %6, %cst_10 {dimension_numbers = #tpu.dot_dimension_numbers<[1], [0], [0], [1], [0, 0, 1, 1], [], []>} : vector<8x128xf32>, vector<128x128xf32>, vector<8x128xf32> -> vector<8x128xf32>
    %c0_11 = arith.constant 0 : index
    %c0_12 = arith.constant 0 : index
    %c0_13 = arith.constant 0 : index
    %8 = vector.load %arg3[%c0_11, %c0_12, %c0_13] : memref<5x1x128xf32, #tpu.memory_space<vmem>>, vector<1x1x128xf32>
    %9 = vector.shape_cast %8 : vector<1x1x128xf32> to vector<1x128xf32>
    %10 = vector.broadcast %9 : vector<1x128xf32> to vector<8x128xf32>
    %11 = arith.addf %7, %10 : vector<8x128xf32>
    %12 = math.tanh %11 : vector<8x128xf32>
    %c1 = arith.constant 1 : index
    %c0_14 = arith.constant 0 : index
    %c0_15 = arith.constant 0 : index
    %13 = vector.load %arg2[%c1, %c0_14, %c0_15] : memref<5x128x128xf32, #tpu.memory_space<vmem>>, vector<1x128x128xf32>
    %14 = vector.shape_cast %13 : vector<1x128x128xf32> to vector<128x128xf32>
    %cst_16 = arith.constant dense<0.000000e+00> : vector<8x128xf32>
    %15 = tpu.matmul %12, %14, %cst_16 {dimension_numbers = #tpu.dot_dimension_numbers<[1], [0], [0], [1], [0, 0, 1, 1], [], []>} : vector<8x128xf32>, vector<128x128xf32>, vector<8x128xf32> -> vector<8x128xf32>
    %c1_17 = arith.constant 1 : index
    %c0_18 = arith.constant 0 : index
    %c0_19 = arith.constant 0 : index
    %16 = vector.load %arg3[%c1_17, %c0_18, %c0_19] : memref<5x1x128xf32, #tpu.memory_space<vmem>>, vector<1x1x128xf32>
    %17 = vector.shape_cast %16 : vector<1x1x128xf32> to vector<1x128xf32>
    %18 = vector.broadcast %17 : vector<1x128xf32> to vector<8x128xf32>
    %19 = arith.addf %15, %18 : vector<8x128xf32>
    %20 = math.tanh %19 : vector<8x128xf32>
    %21 = vector.extract_strided_slice %20 {offsets = [0, 0], sizes = [8, 100], strides = [1, 1]} : vector<8x128xf32> to vector<8x100xf32>
    %c0_20 = arith.constant 0 : index
    %c0_21 = arith.constant 0 : index
    %22 = vector.load %arg5[%c0_20, %c0_21] : memref<8x100xf32, #tpu.memory_space<vmem>>, vector<8x100xf32>
    tpu.vector_store %arg5[%c0_20, %c0_21], %21 {strides = array<i32>} : memref<8x100xf32, #tpu.memory_space<vmem>>, vector<8x100xf32>,
    %c2 = arith.constant 2 : index
    %c0_22 = arith.constant 0 : index
    %c0_23 = arith.constant 0 : index
    %23 = vector.load %arg2[%c2, %c0_22, %c0_23] : memref<5x128x128xf32, #tpu.memory_space<vmem>>, vector<1x128x128xf32>
    %24 = vector.shape_cast %23 : vector<1x128x128xf32> to vector<128x128xf32>
    %cst_24 = arith.constant dense<0.000000e+00> : vector<8x128xf32>
    %25 = tpu.matmul %20, %24, %cst_24 {dimension_numbers = #tpu.dot_dimension_numbers<[1], [0], [0], [1], [0, 0, 1, 1], [], []>} : vector<8x128xf32>, vector<128x128xf32>, vector<8x128xf32> -> vector<8x128xf32>
    %c2_25 = arith.constant 2 : index
    %c0_26 = arith.constant 0 : index
    %c0_27 = arith.constant 0 : index
    %26 = vector.load %arg3[%c2_25, %c0_26, %c0_27] : memref<5x1x128xf32, #tpu.memory_space<vmem>>, vector<1x1x128xf32>
    %27 = vector.shape_cast %26 : vector<1x1x128xf32> to vector<1x128xf32>
    %28 = vector.broadcast %27 : vector<1x128xf32> to vector<8x128xf32>
    %29 = arith.addf %25, %28 : vector<8x128xf32>
    %30 = math.tanh %29 : vector<8x128xf32>
    %c3 = arith.constant 3 : index
    %c0_28 = arith.constant 0 : index
    %c0_29 = arith.constant 0 : index
    %31 = vector.load %arg2[%c3, %c0_28, %c0_29] : memref<5x128x128xf32, #tpu.memory_space<vmem>>, vector<1x128x128xf32>
    %32 = vector.shape_cast %31 : vector<1x128x128xf32> to vector<128x128xf32>
    %cst_30 = arith.constant dense<0.000000e+00> : vector<8x128xf32>
    %33 = tpu.matmul %30, %32, %cst_30 {dimension_numbers = #tpu.dot_dimension_numbers<[1], [0], [0], [1], [0, 0, 1, 1], [], []>} : vector<8x128xf32>, vector<128x128xf32>, vector<8x128xf32> -> vector<8x128xf32>
    %c3_31 = arith.constant 3 : index
    %c0_32 = arith.constant 0 : index
    %c0_33 = arith.constant 0 : index
    %34 = vector.load %arg3[%c3_31, %c0_32, %c0_33] : memref<5x1x128xf32, #tpu.memory_space<vmem>>, vector<1x1x128xf32>
    %35 = vector.shape_cast %34 : vector<1x1x128xf32> to vector<1x128xf32>
    %36 = vector.broadcast %35 : vector<1x128xf32> to vector<8x128xf32>
    %37 = arith.addf %33, %36 : vector<8x128xf32>
    %38 = math.tanh %37 : vector<8x128xf32>
    %c4 = arith.constant 4 : index
    %c0_34 = arith.constant 0 : index
    %c0_35 = arith.constant 0 : index
    %39 = vector.load %arg2[%c4, %c0_34, %c0_35] : memref<5x128x128xf32, #tpu.memory_space<vmem>>, vector<1x128x128xf32>
    %40 = vector.shape_cast %39 : vector<1x128x128xf32> to vector<128x128xf32>
    %cst_36 = arith.constant dense<0.000000e+00> : vector<8x128xf32>
    %41 = tpu.matmul %38, %40, %cst_36 {dimension_numbers = #tpu.dot_dimension_numbers<[1], [0], [0], [1], [0, 0, 1, 1], [], []>} : vector<8x128xf32>, vector<128x128xf32>, vector<8x128xf32> -> vector<8x128xf32>
    %c4_37 = arith.constant 4 : index
    %c0_38 = arith.constant 0 : index
    %c0_39 = arith.constant 0 : index
    %42 = vector.load %arg3[%c4_37, %c0_38, %c0_39] : memref<5x1x128xf32, #tpu.memory_space<vmem>>, vector<1x1x128xf32>
    %43 = vector.shape_cast %42 : vector<1x1x128xf32> to vector<1x128xf32>
    %44 = vector.broadcast %43 : vector<1x128xf32> to vector<8x128xf32>
    %45 = arith.addf %41, %44 : vector<8x128xf32>
    %46 = vector.extract_strided_slice %45 {offsets = [0, 0], sizes = [8, 20], strides = [1, 1]} : vector<8x128xf32> to vector<8x20xf32>
    %47 = math.exp %46 : vector<8x20xf32>
    %cst_40 = arith.constant 1.000000e+00 : f32
    %48 = vector.broadcast %cst_40 : f32 to vector<8x20xf32>
    %49 = arith.divf %48, %47 : vector<8x20xf32>
    %50 = arith.subf %47, %49 : vector<8x20xf32>
    %cst_41 = arith.constant 5.000000e-01 : f32
    %51 = vector.broadcast %cst_41 : f32 to vector<8x20xf32>
    %52 = arith.mulf %51, %50 : vector<8x20xf32>
    %c0_42 = arith.constant 0 : index
    %c0_43 = arith.constant 0 : index
    %53 = vector.load %arg4[%c0_42, %c0_43] : memref<8x20xf32, #tpu.memory_space<vmem>>, vector<8x20xf32>
    tpu.vector_store %arg4[%c0_42, %c0_43], %52 {strides = array<i32>} : memref<8x20xf32, #tpu.memory_space<vmem>>, vector<8x20xf32>,
    return
  }
  func.func @transform_0(%arg0: i32) -> (i32, i32) {
    %c0_i32 = arith.constant 0 : i32
    %c0_i32_0 = arith.constant 0 : i32
    return %arg0, %c0_i32 : i32, i32
  }
  func.func @transform_1(%arg0: i32) -> (i32, i32, i32) {
    %c0_i32 = arith.constant 0 : i32
    %c0_i32_0 = arith.constant 0 : i32
    %c0_i32_1 = arith.constant 0 : i32
    %c0_i32_2 = arith.constant 0 : i32
    return %c0_i32, %c0_i32_0, %c0_i32_1 : i32, i32, i32
  }
  func.func @transform_2(%arg0: i32) -> (i32, i32, i32) {
    %c0_i32 = arith.constant 0 : i32
    %c0_i32_0 = arith.constant 0 : i32
    %c0_i32_1 = arith.constant 0 : i32
    %c0_i32_2 = arith.constant 0 : i32
    return %c0_i32, %c0_i32_0, %c0_i32_1 : i32, i32, i32
  }
  func.func @transform_3(%arg0: i32) -> (i32, i32) {
    %c0_i32 = arith.constant 0 : i32
    %c0_i32_0 = arith.constant 0 : i32
    return %arg0, %c0_i32 : i32, i32
  }
  func.func @transform_4(%arg0: i32) -> (i32, i32) {
    %c0_i32 = arith.constant 0 : i32
    %c0_i32_0 = arith.constant 0 : i32
    return %arg0, %c0_i32 : i32, i32
  }
}

</mosaic_0001>

<llo_original>
// kernel: fwd.1
$region0: #{fwd.1}
  #allocation0 [shape = 'u32[]', space=smem, size = 0x4, offset = 0x4, fixed_abs, tag = 'smem constant byte address 0x4 - core index']
  #allocation1 [shape = 'u32[72,128]{1,0:T(1,128)}', space=vmem, size = 0x9000, scoped, tag = 'internal scratch']
  #allocation2 [shape = 'f32[8,128]{1,0:T(8,128)}', space=vmem, size = 0x1000, scoped, tag = 'scratch operand']
  %s0 = inlined_call_operand.hbm [shape: f32[8,20], index: 0, kind: input, shape index: {}]
  %s1 = inlined_call_operand.hbm [shape: f32[5,128,128], index: 1, kind: input, shape index: {}]
  %s2 = inlined_call_operand.hbm [shape: f32[5,1,128], index: 2, kind: input, shape index: {}]
  %s3 = inlined_call_operand.hbm [shape: f32[8,20], index: 3, kind: output, shape index: {0}]
  %s4 = inlined_call_operand.hbm [shape: f32[8,100], index: 4, kind: output, shape index: {1}]
  %5 = xla_tuple %s3, %s4
  %s6 = sld [smem:[#allocation0]]
  $region42: #{fwd.1} parent=0
    _
  %s8 = ssub.s32 1, %s6
  %s9 = scalar_select 0, %s8, %s6
  $region1: #{fwd.1} parent=0
    #allocation3 [shape = 'u8[4096]{0}', space=vmem, size = 0x1000, scoped, tag = 'input window, operand 0, single buffered']
    #allocation4 [shape = 's32[1]{0}', space=sflag, size = 0x4, scoped, tag = 'scoped memory for fwd.1']
    #allocation5 [shape = 's32[1]{0}', space=sflag, size = 0x4, scoped, tag = 'scoped memory for fwd.1']
    #allocation6 [shape = 'u8[327680]{0}', space=vmem, size = 0x50000, scoped, tag = 'input window, operand 1, single buffered']
    #allocation7 [shape = 's32[1]{0}', space=sflag, size = 0x4, scoped, tag = 'scoped memory for fwd.1']
    #allocation8 [shape = 'u8[2560]{0}', space=vmem, size = 0xc00, scoped, tag = 'input window, operand 2, single buffered']
    #allocation9 [shape = 'u8[4096]{0}', space=vmem, size = 0x1000, scoped, tag = 'output window, operand 0, single buffered']
    #allocation10 [shape = 'u8[4096]{0}', space=vmem, size = 0x1000, scoped, tag = 'output window, operand 1, single buffered']
    #allocation11 [shape = 's32[1]{0}', space=sflag, size = 0x4, scoped, tag = 'scoped memory for fwd.1']
    %10 = vsyncpa [#allocation4], 0
    %11 = vsyncpa [#allocation7], 0
    %12 = vsyncpa [#allocation5], 0
    %13 = vsyncpa [#allocation11], 0
    // Predicated region
    $region2: #{fwd.1} parent=1 // pred_check
      _
    $region3: #{fwd.1} parent=1 // pred_check_branch
      %15 = sbr.rel (0) target = $region5
    $region4: #{fwd.1} parent=1 // pred_region
      %17 = vsyncadd [#allocation4], 0
      %s19 = sshll.u32 %s0, 4
      %s20 = int_to_ptr.hbm [resolvable:$true] %s19
      %s21 = sshll.u32 [#allocation3], 4
      %s22 = int_to_ptr.vmem [resolvable:$true] %s21
      %24 = dma.hbm_to_vmem [thread:$0]  %s20, 128, %s22, [#allocation4]
    $region5: #{fwd.1} parent=1 // pred_fallthru
      _
    // Predicated region
    $region6: #{fwd.1} parent=1 // pred_check
      _
    $region7: #{fwd.1} parent=1 // pred_check_branch
      %26 = sbr.rel (0) target = $region9
    $region8: #{fwd.1} parent=1 // pred_region
      %28 = vsyncadd [#allocation7], 0
      %s29 = sshll.u32 %s1, 4
      %s30 = int_to_ptr.hbm [resolvable:$true] %s29
      %s31 = sshll.u32 [#allocation6], 4
      %s32 = int_to_ptr.vmem [resolvable:$true] %s31
      %37 = dma.hbm_to_vmem [thread:$0]  %s30, 10240, %s32, [#allocation7], 128, 128, 8
    $region9: #{fwd.1} parent=1 // pred_fallthru
      _
    // Predicated region
    $region10: #{fwd.1} parent=1 // pred_check
      _
    $region11: #{fwd.1} parent=1 // pred_check_branch
      %39 = sbr.rel (0) target = $region13
    $region12: #{fwd.1} parent=1 // pred_region
      %41 = vsyncadd [#allocation7], 0
      %s42 = sshll.u32 %s2, 4
      %s43 = int_to_ptr.hbm [resolvable:$true] %s42
      %s44 = sshll.u32 [#allocation8], 4
      %s45 = int_to_ptr.vmem [resolvable:$true] %s44
      %50 = dma.hbm_to_vmem [thread:$0]  %s43, 80, %s45, [#allocation7], 16, 16, 1
    $region13: #{fwd.1} parent=1 // pred_fallthru
      _
    // Predicated region
    $region14: #{fwd.1} parent=1 // pred_check
      _
    $region15: #{fwd.1} parent=1 // pred_check_branch
      %52 = sbr.rel (0) target = $region17
    $region16: #{fwd.1} parent=1 // pred_region
      %54 = dma.done [#allocation4], 128
    $region17: #{fwd.1} parent=1 // pred_fallthru
      _
    // Predicated region
    $region18: #{fwd.1} parent=1 // pred_check
      _
    $region19: #{fwd.1} parent=1 // pred_check_branch
      %56 = sbr.rel (0) target = $region21
    $region20: #{fwd.1} parent=1 // pred_region
      %58 = dma.done [#allocation7], 10240
    $region21: #{fwd.1} parent=1 // pred_fallthru
      _
    // Predicated region
    $region22: #{fwd.1} parent=1 // pred_check
      _
    $region23: #{fwd.1} parent=1 // pred_check_branch
      %60 = sbr.rel (0) target = $region25
    $region24: #{fwd.1} parent=1 // pred_region
      %62 = dma.done [#allocation7], 80
    $region25: #{fwd.1} parent=1 // pred_fallthru
      _
    %63 = vst [vmem:[#allocation2] sm:$0xff] 0.0
    %v64 = vld [vmem:[#allocation3] sm:$0xff]
    %vm65 = vcmask 162816
    %66 = vst.msk [vmem:[#allocation2] sm:$0xff] %vm65, %v64
    %v67 = vld [vmem:[#allocation2] sm:$0xff]
    %v68 = vld [vmem:[#allocation6] sm:$0xff]
    %v69 = vld [vmem:[#allocation6 + $0x8] sm:$0xff]
    %v70 = vld [vmem:[#allocation6 + $0x10] sm:$0xff]
    %v71 = vld [vmem:[#allocation6 + $0x18] sm:$0xff]
    %v72 = vld [vmem:[#allocation6 + $0x20] sm:$0xff]
    %v73 = vld [vmem:[#allocation6 + $0x28] sm:$0xff]
    %v74 = vld [vmem:[#allocation6 + $0x30] sm:$0xff]
    %v75 = vld [vmem:[#allocation6 + $0x38] sm:$0xff]
    %v76 = vld [vmem:[#allocation6 + $0x40] sm:$0xff]
    %v77 = vld [vmem:[#allocation6 + $0x48] sm:$0xff]
    %v78 = vld [vmem:[#allocation6 + $0x50] sm:$0xff]
    %v79 = vld [vmem:[#allocation6 + $0x58] sm:$0xff]
    %v80 = vld [vmem:[#allocation6 + $0x60] sm:$0xff]
    %v81 = vld [vmem:[#allocation6 + $0x68] sm:$0xff]
    %v82 = vld [vmem:[#allocation6 + $0x70] sm:$0xff]
    %v83 = vld [vmem:[#allocation6 + $0x78] sm:$0xff]
    %v84 = vld [vmem:[#allocation8] sm:$0x1]
    %v86 = vperm.slane %v84, 0
    %88 = vmatpush.msra.mxu0 %v83
    %89 = vmatpush.msra.mxu0 %v82
    %90 = vmatpush.msra.mxu0 %v81
    %91 = vmatpush.msra.mxu0 %v80
    %92 = vmatpush.msra.mxu0 %v79
    %93 = vmatpush.msra.mxu0 %v78
    %94 = vmatpush.msra.mxu0 %v77
    %95 = vmatpush.msra.mxu0 %v76
    %96 = vmatpush.msra.mxu0 %v75
    %97 = vmatpush.msra.mxu0 %v74
    %98 = vmatpush.msra.mxu0 %v73
    %99 = vmatpush.msra.mxu0 %v72
    %100 = vmatpush.msra.mxu0 %v71
    %101 = vmatpush.msra.mxu0 %v70
    %102 = vmatpush.msra.mxu0 %v69
    %103 = vmatpush.msra.mxu0 %v68
    %104 = vmatmul.f32.gmra.mxu0 %v67
    %v105 = vpop.f32.mrf.mxu0
    %v106 = vadd.f32 %v86, %v105
    %107 = vdwg.mxu0
    %v108 = vtanh.pop %v106
    %s109 = scalar_lea.vmem [#allocation6], 128
    %v110 = vld [vmem:[%s109] sm:$0xff]
    %v111 = vld [vmem:[%s109 + $0x8] sm:$0xff]
    %v112 = vld [vmem:[%s109 + $0x10] sm:$0xff]
    %v113 = vld [vmem:[%s109 + $0x18] sm:$0xff]
    %v114 = vld [vmem:[%s109 + $0x20] sm:$0xff]
    %v115 = vld [vmem:[%s109 + $0x28] sm:$0xff]
    %v116 = vld [vmem:[%s109 + $0x30] sm:$0xff]
    %v117 = vld [vmem:[%s109 + $0x38] sm:$0xff]
    %v118 = vld [vmem:[%s109 + $0x40] sm:$0xff]
    %v119 = vld [vmem:[%s109 + $0x48] sm:$0xff]
    %v120 = vld [vmem:[%s109 + $0x50] sm:$0xff]
    %v121 = vld [vmem:[%s109 + $0x58] sm:$0xff]
    %v122 = vld [vmem:[%s109 + $0x60] sm:$0xff]
    %v123 = vld [vmem:[%s109 + $0x68] sm:$0xff]
    %v124 = vld [vmem:[%s109 + $0x70] sm:$0xff]
    %v125 = vld [vmem:[%s109 + $0x78] sm:$0xff]
    %s126 = scalar_lea.vmem [#allocation8], 1
    %v127 = vld [vmem:[%s126] sm:$0x1]
    %v129 = vperm.slane %v127, 0
    %131 = vmatpush.msra.mxu0 %v125
    %132 = vmatpush.msra.mxu0 %v124
    %133 = vmatpush.msra.mxu0 %v123
    %134 = vmatpush.msra.mxu0 %v122
    %135 = vmatpush.msra.mxu0 %v121
    %136 = vmatpush.msra.mxu0 %v120
    %137 = vmatpush.msra.mxu0 %v119
    %138 = vmatpush.msra.mxu0 %v118
    %139 = vmatpush.msra.mxu0 %v117
    %140 = vmatpush.msra.mxu0 %v116
    %141 = vmatpush.msra.mxu0 %v115
    %142 = vmatpush.msra.mxu0 %v114
    %143 = vmatpush.msra.mxu0 %v113
    %144 = vmatpush.msra.mxu0 %v112
    %145 = vmatpush.msra.mxu0 %v111
    %146 = vmatpush.msra.mxu0 %v110
    %147 = vmatmul.f32.gmra.mxu0 %v108
    %v148 = vpop.f32.mrf.mxu0
    %v149 = vadd.f32 %v129, %v148
    %150 = vdwg.mxu0
    %v151 = vtanh.pop %v149
    %vm152 = vcmask 818176
    %153 = vst.msk [vmem:[#allocation10] sm:$0xff] %vm152, %v151
    %s154 = scalar_lea.vmem [#allocation6], 256
    %v155 = vld [vmem:[%s154] sm:$0xff]
    %v156 = vld [vmem:[%s154 + $0x8] sm:$0xff]
    %v157 = vld [vmem:[%s154 + $0x10] sm:$0xff]
    %v158 = vld [vmem:[%s154 + $0x18] sm:$0xff]
    %v159 = vld [vmem:[%s154 + $0x20] sm:$0xff]
    %v160 = vld [vmem:[%s154 + $0x28] sm:$0xff]
    %v161 = vld [vmem:[%s154 + $0x30] sm:$0xff]
    %v162 = vld [vmem:[%s154 + $0x38] sm:$0xff]
    %v163 = vld [vmem:[%s154 + $0x40] sm:$0xff]
    %v164 = vld [vmem:[%s154 + $0x48] sm:$0xff]
    %v165 = vld [vmem:[%s154 + $0x50] sm:$0xff]
    %v166 = vld [vmem:[%s154 + $0x58] sm:$0xff]
    %v167 = vld [vmem:[%s154 + $0x60] sm:$0xff]
    %v168 = vld [vmem:[%s154 + $0x68] sm:$0xff]
    %v169 = vld [vmem:[%s154 + $0x70] sm:$0xff]
    %v170 = vld [vmem:[%s154 + $0x78] sm:$0xff]
    %s171 = scalar_lea.vmem [#allocation8], 2
    %v172 = vld [vmem:[%s171] sm:$0x1]
    %v174 = vperm.slane %v172, 0
    %176 = vmatpush.msra.mxu0 %v170
    %177 = vmatpush.msra.mxu0 %v169
    %178 = vmatpush.msra.mxu0 %v168
    %179 = vmatpush.msra.mxu0 %v167
    %180 = vmatpush.msra.mxu0 %v166
    %181 = vmatpush.msra.mxu0 %v165
    %182 = vmatpush.msra.mxu0 %v164
    %183 = vmatpush.msra.mxu0 %v163
    %184 = vmatpush.msra.mxu0 %v162
    %185 = vmatpush.msra.mxu0 %v161
    %186 = vmatpush.msra.mxu0 %v160
    %187 = vmatpush.msra.mxu0 %v159
    %188 = vmatpush.msra.mxu0 %v158
    %189 = vmatpush.msra.mxu0 %v157
    %190 = vmatpush.msra.mxu0 %v156
    %191 = vmatpush.msra.mxu0 %v155
    %192 = vmatmul.f32.gmra.mxu0 %v151
    %v193 = vpop.f32.mrf.mxu0
    %v194 = vadd.f32 %v174, %v193
    %195 = vdwg.mxu0
    %v196 = vtanh.pop %v194
    %s197 = scalar_lea.vmem [#allocation6], 384
    %v198 = vld [vmem:[%s197] sm:$0xff]
    %v199 = vld [vmem:[%s197 + $0x8] sm:$0xff]
    %v200 = vld [vmem:[%s197 + $0x10] sm:$0xff]
    %v201 = vld [vmem:[%s197 + $0x18] sm:$0xff]
    %v202 = vld [vmem:[%s197 + $0x20] sm:$0xff]
    %v203 = vld [vmem:[%s197 + $0x28] sm:$0xff]
    %v204 = vld [vmem:[%s197 + $0x30] sm:$0xff]
    %v205 = vld [vmem:[%s197 + $0x38] sm:$0xff]
    %v206 = vld [vmem:[%s197 + $0x40] sm:$0xff]
    %v207 = vld [vmem:[%s197 + $0x48] sm:$0xff]
    %v208 = vld [vmem:[%s197 + $0x50] sm:$0xff]
    %v209 = vld [vmem:[%s197 + $0x58] sm:$0xff]
    %v210 = vld [vmem:[%s197 + $0x60] sm:$0xff]
    %v211 = vld [vmem:[%s197 + $0x68] sm:$0xff]
    %v212 = vld [vmem:[%s197 + $0x70] sm:$0xff]
    %v213 = vld [vmem:[%s197 + $0x78] sm:$0xff]
    %s214 = scalar_lea.vmem [#allocation8], 3
    %v215 = vld [vmem:[%s214] sm:$0x1]
    %v217 = vperm.slane %v215, 0
    %219 = vmatpush.msra.mxu0 %v213
    %220 = vmatpush.msra.mxu0 %v212
    %221 = vmatpush.msra.mxu0 %v211
    %222 = vmatpush.msra.mxu0 %v210
    %223 = vmatpush.msra.mxu0 %v209
    %224 = vmatpush.msra.mxu0 %v208
    %225 = vmatpush.msra.mxu0 %v207
    %226 = vmatpush.msra.mxu0 %v206
    %227 = vmatpush.msra.mxu0 %v205
    %228 = vmatpush.msra.mxu0 %v204
    %229 = vmatpush.msra.mxu0 %v203
    %230 = vmatpush.msra.mxu0 %v202
    %231 = vmatpush.msra.mxu0 %v201
    %232 = vmatpush.msra.mxu0 %v200
    %233 = vmatpush.msra.mxu0 %v199
    %234 = vmatpush.msra.mxu0 %v198
    %235 = vmatmul.f32.gmra.mxu0 %v196
    %v236 = vpop.f32.mrf.mxu0
    %v237 = vadd.f32 %v217, %v236
    %238 = vdwg.mxu0
    %v239 = vtanh.pop %v237
    %s240 = scalar_lea.vmem [#allocation6], 512
    %v241 = vld [vmem:[%s240] sm:$0xff]
    %v242 = vld [vmem:[%s240 + $0x8] sm:$0xff]
    %v243 = vld [vmem:[%s240 + $0x10] sm:$0xff]
    %v244 = vld [vmem:[%s240 + $0x18] sm:$0xff]
    %v245 = vld [vmem:[%s240 + $0x20] sm:$0xff]
    %v246 = vld [vmem:[%s240 + $0x28] sm:$0xff]
    %v247 = vld [vmem:[%s240 + $0x30] sm:$0xff]
    %v248 = vld [vmem:[%s240 + $0x38] sm:$0xff]
    %v249 = vld [vmem:[%s240 + $0x40] sm:$0xff]
    %v250 = vld [vmem:[%s240 + $0x48] sm:$0xff]
    %v251 = vld [vmem:[%s240 + $0x50] sm:$0xff]
    %v252 = vld [vmem:[%s240 + $0x58] sm:$0xff]
    %v253 = vld [vmem:[%s240 + $0x60] sm:$0xff]
    %v254 = vld [vmem:[%s240 + $0x68] sm:$0xff]
    %v255 = vld [vmem:[%s240 + $0x70] sm:$0xff]
    %v256 = vld [vmem:[%s240 + $0x78] sm:$0xff]
    %s257 = scalar_lea.vmem [#allocation8], 4
    %v258 = vld [vmem:[%s257] sm:$0x1]
    %v260 = vperm.slane %v258, 0
    %262 = vmatpush.msra.mxu0 %v256
    %263 = vmatpush.msra.mxu0 %v255
    %264 = vmatpush.msra.mxu0 %v254
    %265 = vmatpush.msra.mxu0 %v253
    %266 = vmatpush.msra.mxu0 %v252
    %267 = vmatpush.msra.mxu0 %v251
    %268 = vmatpush.msra.mxu0 %v250
    %269 = vmatpush.msra.mxu0 %v249
    %270 = vmatpush.msra.mxu0 %v248
    %271 = vmatpush.msra.mxu0 %v247
    %272 = vmatpush.msra.mxu0 %v246
    %273 = vmatpush.msra.mxu0 %v245
    %274 = vmatpush.msra.mxu0 %v244
    %275 = vmatpush.msra.mxu0 %v243
    %276 = vmatpush.msra.mxu0 %v242
    %277 = vmatpush.msra.mxu0 %v241
    %278 = vmatmul.f32.gmra.mxu0 %v239
    %v279 = vpop.f32.mrf.mxu0
    %v280 = vadd.f32 %v260, %v279
    %281 = vdwg.mxu0
    %v282 = vmul.f32 %v280, 1.442695
    %v283 = vpow.pop %v282
    %v284 = vrcp.pop %v283
    %v285 = vmul.f32 %v283, %v284
    %v286 = vsub.f32 1.0, %v285
    %v287 = vmul.f32 %v284, %v286
    %v288 = vadd.f32 %v284, %v287
    %vm289 = vweird.f32 %v283
    %vm290 = vweird.f32 %v284
    %vm291 = vmor %vm289, %vm290
    %v292 = vsel %vm291, %v284, %v288
    %v293 = vand.u32 2147483647, %v283
    %vm294 = vcmp.eq.f32.partialorder %v293, 8.507059e+37
    %v295 = vand.u32 %v283, 2147483648
    %v296 = vor.u32 1.1754944e-38, %v295
    %v297 = vsel %vm294, %v296, %v292
    %v298 = vmul.f32 1.0, %v297
    %v299 = vsub.f32 %v283, %v298
    %v300 = vmul.f32 %v299, 0.5
    %301 = vst.msk [vmem:[#allocation9] sm:$0xff] %vm65, %v300
    // Predicated region
    $region26: #{fwd.1} parent=1 // pred_check
      _
    $region27: #{fwd.1} parent=1 // pred_check_branch
      %303 = sbr.rel (0) target = $region29
    $region28: #{fwd.1} parent=1 // pred_region
      %305 = vsyncadd [#allocation5], 0
      %s307 = sshll.u32 [#allocation9], 4
      %s308 = int_to_ptr.vmem [resolvable:$true] %s307
      %s309 = sshll.u32 %s3, 4
      %s310 = int_to_ptr.hbm [resolvable:$true] %s309
      %312 = dma.vmem_to_hbm [thread:$0]  %s308, 128, %s310, [#allocation5]
    $region29: #{fwd.1} parent=1 // pred_fallthru
      _
    // Predicated region
    $region30: #{fwd.1} parent=1 // pred_check
      _
    $region31: #{fwd.1} parent=1 // pred_check_branch
      %314 = sbr.rel (0) target = $region33
    $region32: #{fwd.1} parent=1 // pred_region
      %316 = vsyncadd [#allocation11], 0
      %s318 = sshll.u32 [#allocation10], 4
      %s319 = int_to_ptr.vmem [resolvable:$true] %s318
      %s320 = sshll.u32 %s4, 4
      %s321 = int_to_ptr.hbm [resolvable:$true] %s320
      %323 = dma.vmem_to_hbm [thread:$0]  %s319, 128, %s321, [#allocation11]
    $region33: #{fwd.1} parent=1 // pred_fallthru
      _
    // Predicated region
    $region34: #{fwd.1} parent=1 // pred_check
      _
    $region35: #{fwd.1} parent=1 // pred_check_branch
      %325 = sbr.rel (0) target = $region37
    $region36: #{fwd.1} parent=1 // pred_region
      %327 = dma.done [#allocation5], 128
    $region37: #{fwd.1} parent=1 // pred_fallthru
      _
    // Predicated region
    $region38: #{fwd.1} parent=1 // pred_check
      _
    $region39: #{fwd.1} parent=1 // pred_check_branch
      %329 = sbr.rel (0) target = $region41
    $region40: #{fwd.1} parent=1 // pred_region
      %331 = dma.done [#allocation11], 128
    $region41: #{fwd.1} parent=1 // pred_fallthru
      _
    %332 = vsyncpa [#allocation4], 1
    %333 = vsyncpa [#allocation7], 1
    %334 = vsyncpa [#allocation5], 1
    %335 = vsyncpa [#allocation11], 1

</llo_original>
